<compile_context>
chip_gen: v7x
topology: tpu7x:2x2x1
jax: 0.10.0
libtpu: 0.0.40
codegen_flags: <defaults>
</compile_context>

<pallas_src>
import functools

import jax
import jax.numpy as jnp
from jax.experimental import pallas as pl
from jax.experimental.pallas import tpu as pltpu


def _round_up(x, m):
    return ((x + m - 1) // m) * m


def _nfl_kernel(pred_ref, labels_ref, loss_ref, *, gamma):
    # Classes on sublanes (C=10 -> padded to 16), samples lane-dense.
    x = pred_ref[...].astype(jnp.float32)            # (C, TN)
    c, tn = x.shape

    # Numerically stable shifted exponentials over the class axis (axis 0).
    m = jnp.max(x, axis=0, keepdims=True)            # (1, TN)
    z = x - m
    ez = jnp.exp(z)                                  # (C, TN)
    sez = jnp.sum(ez, axis=0, keepdims=True)         # (1, TN)
    logpt = z - jnp.log(sez)                         # log_softmax, (C, TN)

    def powg(y):                                     # y >= 0 by construction
        if gamma == 0.5:
            return jnp.sqrt(y)
        elif gamma == 1.0:
            return y
        elif gamma == 2.0:
            return y * y
        else:
            return jnp.exp(gamma * jnp.log(jnp.maximum(y, 1e-30)))

    # (1 - p_c)^g = (sez - ez_c)^g / sez^g ; the sez^g factor and the two
    # minus signs of the reference formulation cancel in the final ratio,
    # so neither probs nor any negate is ever materialized.
    normp = jnp.sum(powg(sez - ez) * logpt, axis=0, keepdims=True)   # (1, TN)

    # Target-class gather via masked select + sublane reduce (no one-hot
    # astype/multiply, no extra exp for pt).
    lab = labels_ref[...]                                            # (1, TN)
    row = jax.lax.broadcasted_iota(jnp.int32, (c, tn), 0)            # (C, TN)
    mask = row == lab
    ez_t = jnp.sum(jnp.where(mask, ez, 0.0), axis=0, keepdims=True)      # (1, TN)
    logpt_t = jnp.sum(jnp.where(mask, logpt, 0.0), axis=0, keepdims=True)

    nflp = powg(sez - ez_t) * logpt_t                                # (1, TN)
    # Per-sample normalized focal loss == nflp / normp (signs/sez^g cancel).
    loss_ref[...] = nflp * pl.reciprocal(normp, approx=True)


def _pick_tile_n(n, tile_n=None):
    kind = ""
    try:
        kind = jax.devices()[0].device_kind.lower()
    except Exception:
        pass
    if tile_n is None:
        if "v5" in kind:
            tile_n = 32768       # HBM-bound: amortize per-step overhead
        elif "v6" in kind:
            tile_n = 16384
        else:
            tile_n = 8192        # v7x (64 MiB VMEM) / unknown: stay modest
    # Guarantee >= 2 grid steps for large-enough N so ("parallel",) can shard
    # tiles across both v7x TensorCores (negligible cost on 1-TC parts).
    if n > 128:
        tile_n = min(int(tile_n), _round_up(pl.cdiv(n, 2), 128))
    tile_n = min(int(tile_n), _round_up(n, 128))
    return max(128, _round_up(tile_n, 128))


def normalized_focal_loss(pred, labels, *, num_classes=10, gamma=0.5, scale=1.0,
                          size_average=True, tile_n=None):
    """pred: [N, C] logits (any float dtype), labels: [N] int. Returns scalar."""
    n, c = pred.shape
    assert c == num_classes

    tile_n = _pick_tile_n(n, tile_n)
    grid = pl.cdiv(n, tile_n)                         # ragged last tile, no pad

    # Big tiles are only chosen on v5e/v6e (128 MiB physical VMEM): give the
    # pipeline explicit headroom there; the default scoped limit is plenty for
    # <= 8K-wide tiles elsewhere.
    vmem_limit = (100 * 1024 * 1024) if tile_n > 8192 else None

    # Keep the original dtype (no wrapper-side f32 upcast); the kernel upcasts
    # per tile.  No pad: OOB lanes of the ragged last tile read garbage and
    # their writes are masked; real lanes are sliced out before the reduction.
    # TODO(synk): ideally the producer matmul emits logits as [C, N] directly;
    # with [N, C] inputs this transpose is one unavoidable relayout pass
    # (it typically fuses into the producer under jit).
    pred_t = jnp.transpose(pred)                      # (C, N), original dtype
    labels2d = labels.astype(jnp.int32).reshape(1, n)

    kernel = functools.partial(_nfl_kernel, gamma=float(gamma))

    per_sample = pl.pallas_call(
        kernel,
        out_shape=jax.ShapeDtypeStruct((1, n), jnp.float32),
        grid_spec=pltpu.PrefetchScalarGridSpec(
            num_scalar_prefetch=0,
            grid=(grid,),
            in_specs=[
                pl.BlockSpec((c, tile_n), lambda i: (0, i)),
                pl.BlockSpec((1, tile_n), lambda i: (0, i)),
            ],
            out_specs=pl.BlockSpec((1, tile_n), lambda i: (0, i)),
        ),
        compiler_params=pltpu.CompilerParams(
            dimension_semantics=("parallel",),
            vmem_limit_bytes=vmem_limit),
    )(pred_t, labels2d)

    loss = per_sample[0, :n] * scale
    if size_average:
        return jnp.mean(loss)
    return jnp.sum(loss)


def _reference(pred, labels, *, gamma=0.5, scale=1.0, size_average=True):
    # Pure-JAX mirror of the PyTorch NormalizedFocalLoss forward.
    pred = pred.astype(jnp.float32)
    logpt = jax.nn.log_softmax(pred, axis=1)
    probs = jnp.exp(logpt)
    normalizor = jnp.sum(-((1.0 - probs) ** gamma) * logpt, axis=1)
    logpt_t = jnp.take_along_axis(logpt, labels[:, None], axis=1)[:, 0]
    pt = jnp.exp(logpt_t)
    loss = scale * (-((1.0 - pt) ** gamma) * logpt_t) / normalizor
    return jnp.mean(loss) if size_average else jnp.sum(loss)


if __name__ == "__main__":
    key = jax.random.PRNGKey(0)
    k1, k2, k3, k4 = jax.random.split(key, 4)

    # Case 1: small batch, f32 logits (module defaults: 10 classes, gamma=0.5).
    N, C = 16, 10
    pred = jax.random.normal(k1, (N, C), dtype=jnp.float32) * 2.0
    labels = jax.random.randint(k2, (N,), 0, C, dtype=jnp.int32)
    loss = jax.block_until_ready(
        normalized_focal_loss(pred, labels, num_classes=C, gamma=0.5, scale=1.0))
    ref = _reference(pred, labels, gamma=0.5, scale=1.0)
    assert jnp.allclose(loss, ref, rtol=1e-3, atol=1e-5), (loss, ref)

    # Case 2: non-multiple-of-128 batch -> exercises the ragged last tile and
    # the >=2 grid-step split; bf16 logits exercise the original-dtype DMA path.
    N2 = 300
    pred2 = (jax.random.normal(k3, (N2, C), dtype=jnp.float32) * 2.0
             ).astype(jnp.bfloat16)
    labels2 = jax.random.randint(k4, (N2,), 0, C, dtype=jnp.int32)
    loss2 = jax.block_until_ready(
        normalized_focal_loss(pred2, labels2, num_classes=C, gamma=0.5, scale=1.0))
    ref2 = _reference(pred2.astype(jnp.float32), labels2, gamma=0.5, scale=1.0)
    assert jnp.allclose(loss2, ref2, rtol=1e-3, atol=1e-5), (loss2, ref2)

    print("KERNEL_OK")
</pallas_src>

<mosaic_0001>
module attributes {stable_mosaic.version = 11 : i64} {
  func.func @_nfl_kernel(%arg0: i32, %arg1: memref<10x128xf32, #tpu.memory_space<vmem>>, %arg2: memref<1x128xi32, #tpu.memory_space<vmem>>, %arg3: memref<1x128xf32, #tpu.memory_space<vmem>>) attributes {dimension_semantics = [#tpu.dimension_semantics<parallel>], iteration_bounds = array<i64: 1>, scalar_prefetch = 0 : i64, scratch_operands = 0 : i64, tpu.core_type = #tpu.core_type<tc>, window_params = [{transform_indices = @transform_0, window_bounds = array<i64: 10, 128>}, {transform_indices = @transform_1, window_bounds = array<i64: 1, 128>}, {transform_indices = @transform_2, window_bounds = array<i64: 1, 128>}]} {
    %c0 = arith.constant 0 : index
    %c0_0 = arith.constant 0 : index
    %0 = vector.load %arg1[%c0, %c0_0] : memref<10x128xf32, #tpu.memory_space<vmem>>, vector<10x128xf32>
    %cst = arith.constant dense<0xFF800000> : vector<128xf32>
    %1 = vector.multi_reduction <maximumf>, %0, %cst [0] : vector<10x128xf32> to vector<128xf32>
    %2 = vector.shape_cast %1 : vector<128xf32> to vector<1x128xf32>
    %3 = vector.broadcast %2 : vector<1x128xf32> to vector<10x128xf32>
    %4 = arith.subf %0, %3 : vector<10x128xf32>
    %5 = math.exp %4 : vector<10x128xf32>
    %cst_1 = arith.constant dense<0.000000e+00> : vector<128xf32>
    %6 = vector.multi_reduction <add>, %5, %cst_1 [0] : vector<10x128xf32> to vector<128xf32>
    %7 = vector.shape_cast %6 : vector<128xf32> to vector<1x128xf32>
    %8 = math.log %7 : vector<1x128xf32>
    %9 = vector.broadcast %8 : vector<1x128xf32> to vector<10x128xf32>
    %10 = arith.subf %4, %9 : vector<10x128xf32>
    %11 = vector.broadcast %7 : vector<1x128xf32> to vector<10x128xf32>
    %12 = arith.subf %11, %5 : vector<10x128xf32>
    %13 = math.sqrt %12 : vector<10x128xf32>
    %14 = arith.mulf %13, %10 : vector<10x128xf32>
    %cst_2 = arith.constant dense<0.000000e+00> : vector<128xf32>
    %15 = vector.multi_reduction <add>, %14, %cst_2 [0] : vector<10x128xf32> to vector<128xf32>
    %16 = vector.shape_cast %15 : vector<128xf32> to vector<1x128xf32>
    %c0_3 = arith.constant 0 : index
    %c0_4 = arith.constant 0 : index
    %17 = vector.load %arg2[%c0_3, %c0_4] : memref<1x128xi32, #tpu.memory_space<vmem>>, vector<1x128xi32>
    %18 = tpu.iota {dimensions = array<i32: 0>} : vector<10x128xi32>
    %19 = vector.broadcast %17 : vector<1x128xi32> to vector<10x128xi32>
    %20 = arith.cmpi eq, %18, %19 : vector<10x128xi32>
    %cst_5 = arith.constant 0.000000e+00 : f32
    %21 = vector.broadcast %cst_5 : f32 to vector<10x128xf32>
    %22 = arith.select %20, %5, %21 : vector<10x128xi1>, vector<10x128xf32>
    %cst_6 = arith.constant dense<0.000000e+00> : vector<128xf32>
    %23 = vector.multi_reduction <add>, %22, %cst_6 [0] : vector<10x128xf32> to vector<128xf32>
    %24 = vector.shape_cast %23 : vector<128xf32> to vector<1x128xf32>
    %cst_7 = arith.constant 0.000000e+00 : f32
    %25 = vector.broadcast %cst_7 : f32 to vector<10x128xf32>
    %26 = arith.select %20, %10, %25 : vector<10x128xi1>, vector<10x128xf32>
    %cst_8 = arith.constant dense<0.000000e+00> : vector<128xf32>
    %27 = vector.multi_reduction <add>, %26, %cst_8 [0] : vector<10x128xf32> to vector<128xf32>
    %28 = vector.shape_cast %27 : vector<128xf32> to vector<1x128xf32>
    %29 = arith.subf %7, %24 : vector<1x128xf32>
    %30 = math.sqrt %29 : vector<1x128xf32>
    %31 = arith.mulf %30, %28 : vector<1x128xf32>
    %32 = tpu.reciprocal %16 {approx = true} : vector<1x128xf32> -> vector<1x128xf32>
    %33 = arith.mulf %31, %32 : vector<1x128xf32>
    %c0_9 = arith.constant 0 : index
    %c0_10 = arith.constant 0 : index
    %34 = vector.load %arg3[%c0_9, %c0_10] : memref<1x128xf32, #tpu.memory_space<vmem>>, vector<1x128xf32>
    tpu.vector_store %arg3[%c0_9, %c0_10], %33 {strides = array<i32>} : memref<1x128xf32, #tpu.memory_space<vmem>>, vector<1x128xf32>,
    return
  }
  func.func @transform_0(%arg0: i32) -> (i32, i32) {
    %c0_i32 = arith.constant 0 : i32
    %c0_i32_0 = arith.constant 0 : i32
    return %c0_i32, %arg0 : i32, i32
  }
  func.func @transform_1(%arg0: i32) -> (i32, i32) {
    %c0_i32 = arith.constant 0 : i32
    %c0_i32_0 = arith.constant 0 : i32
    return %c0_i32, %arg0 : i32, i32
  }
  func.func @transform_2(%arg0: i32) -> (i32, i32) {
    %c0_i32 = arith.constant 0 : i32
    %c0_i32_0 = arith.constant 0 : i32
    return %c0_i32, %arg0 : i32, i32
  }
}

</mosaic_0001>

<llo_original>
// kernel: tpu_custom_call.1
$region0: #{tpu_custom_call.1}
  #allocation0 [shape = 'u32[]', space=smem, size = 0x4, offset = 0x4, fixed_abs, tag = 'smem constant byte address 0x4 - core index']
  #allocation1 [shape = 'u32[144,128]{1,0:T(1,128)}', space=vmem, size = 0x12000, scoped, tag = 'internal scratch']
  %s0 = inlined_call_operand.hbm [shape: f32[10,16], index: 0, kind: input, shape index: {}]
  %s1 = inlined_call_operand.vmem [shape: s32[1,16], index: 1, kind: input, shape index: {}]
  %s2 = inlined_call_operand.hbm [shape: f32[1,16], index: 2, kind: output, shape index: {}]
  %s3 = sld [smem:[#allocation0]]
  $region22: #{tpu_custom_call.1} parent=0
    _
  %s5 = ssub.s32 1, %s3
  %s6 = scalar_select 0, %s5, %s3
  $region1: #{tpu_custom_call.1} parent=0
    #allocation2 [shape = 'u8[8192]{0}', space=vmem, size = 0x2000, scoped, tag = 'input window, operand 0, single buffered']
    #allocation3 [shape = 's32[1]{0}', space=sflag, size = 0x4, scoped, tag = 'scoped memory for tpu_custom_call.1']
    #allocation4 [shape = 's32[1]{0}', space=sflag, size = 0x4, scoped, tag = 'scoped memory for tpu_custom_call.1']
    #allocation5 [shape = 'u8[512]{0}', space=vmem, size = 0x400, scoped, tag = 'output window, operand 0, single buffered']
    %7 = vsyncpa [#allocation3], 0
    %8 = vsyncpa [#allocation4], 0
    // Predicated region
    $region2: #{tpu_custom_call.1} parent=1 // pred_check
      _
    $region3: #{tpu_custom_call.1} parent=1 // pred_check_branch
      %10 = sbr.rel (0) target = $region5
    $region4: #{tpu_custom_call.1} parent=1 // pred_region
      %s12 = ssub.s32 256, 256
      %13 = vsyncadd [#allocation3], %s12
      %s14 = sshll.u32 [#allocation2], 4
      %s15 = int_to_ptr.vmem [resolvable:$true] %s14
      %20 = dma.hbm_to_vmem [thread:$0]  %s0, 256, %s15, [#allocation3], 128, 128, 8
    $region5: #{tpu_custom_call.1} parent=1 // pred_fallthru
      _
    // Predicated region
    $region6: #{tpu_custom_call.1} parent=1 // pred_check
      _
    $region7: #{tpu_custom_call.1} parent=1 // pred_check_branch
      %22 = sbr.rel (0) target = $region9
    $region8: #{tpu_custom_call.1} parent=1 // pred_region
      _
    $region9: #{tpu_custom_call.1} parent=1 // pred_fallthru
      _
    // Predicated region
    $region10: #{tpu_custom_call.1} parent=1 // pred_check
      _
    $region11: #{tpu_custom_call.1} parent=1 // pred_check_branch
      %24 = sbr.rel (0) target = $region13
    $region12: #{tpu_custom_call.1} parent=1 // pred_region
      %25 = dma.done [#allocation3], 256
    $region13: #{tpu_custom_call.1} parent=1 // pred_fallthru
      _
    %v26 = vld [vmem:[#allocation2] sm:$0xff]
    %v27 = vld [vmem:[#allocation2 + $0x8] sm:$0x3]
    %vm28 = vcmask 1041408
    %v29 = vsel %vm28, %v27, -inf
    %v30 = vmax.f32 %v26, %v29
    %v31 = vrot.slane %v30, 4
    %v32 = vmax.f32 %v30, %v31
    %v33 = vrot.slane %v32, 2
    %v34 = vmax.f32 %v32, %v33
    %v35 = vrot.slane %v34, 1
    %v36 = vmax.f32 %v34, %v35
    %v37 = vsub.f32 %v26, %v36
    %v38 = vsub.f32 %v27, %v36
    %v39 = vmul.f32 %v37, 1.442695
    %v40 = vpow.pop %v39
    %v41 = vmul.f32 %v38, 1.442695
    %v42 = vpow.pop %v41
    %v43 = vsel %vm28, %v42, 0.0
    %v44 = vadd.f32 %v40, %v43
    %v45 = vrot.slane %v44, 4
    %v46 = vadd.f32 %v44, %v45
    %v47 = vrot.slane %v46, 2
    %v48 = vadd.f32 %v46, %v47
    %v49 = vrot.slane %v48, 1
    %v50 = vadd.f32 %v48, %v49
    %v51 = vlog2.pop %v50
    %v52 = vmul.f32 %v51, 0.6931472
    %v53 = vsub.f32 %v37, %v52
    %v54 = vsub.f32 %v38, %v52
    %v55 = vsub.f32 %v50, %v40
    %v56 = vsub.f32 %v50, %v42
    %v57 = vrsqrt.pop %v55
    %v58 = vmul.f32 %v55, %v57
    %vm59 = vcmp.eq.f32.partialorder %v55, inf
    %v60 = vsel %vm59, %v55, %v58
    %vm61 = vcmp.eq.f32.partialorder %v55, 0.0
    %v62 = vand.u32 %v55, 2147483648
    %v63 = vsel %vm61, %v62, %v60
    %v64 = vrsqrt.pop %v56
    %v65 = vmul.f32 %v56, %v64
    %vm66 = vcmp.eq.f32.partialorder %v56, inf
    %v67 = vsel %vm66, %v56, %v65
    %vm68 = vcmp.eq.f32.partialorder %v56, 0.0
    %v69 = vand.u32 %v56, 2147483648
    %v70 = vsel %vm68, %v69, %v67
    %v71 = vmul.f32 %v63, %v53
    %v72 = vmul.f32 %v70, %v54
    %v73 = vsel %vm28, %v72, 0.0
    %v74 = vadd.f32 %v71, %v73
    %v75 = vrot.slane %v74, 4
    %v76 = vadd.f32 %v74, %v75
    %v77 = vrot.slane %v76, 2
    %v78 = vadd.f32 %v76, %v77
    %v79 = vrot.slane %v78, 1
    %v80 = vadd.f32 %v78, %v79
    %v81 = vld [vmem:[%s1] sm:$0x1]
    %v82 = vlaneseq
    %v83 = vshrl.u32 %v82, 7
    %v84 = vadd.s32 %v83, 8
    %v85 = vlaneseq
    %v86 = vshrl.u32 %v85, 7
    %v87 = vsub.s32 0, %v86
    %v88 = vrot.slane %v81, %v87
    %vm89 = vcmp.eq.s32.totalorder %v83, %v88
    %vm90 = vcmp.eq.s32.totalorder %v84, %v88
    %v91 = vsel %vm89, %v40, 0.0
    %v92 = vsel %vm90, %v42, 0.0
    %v93 = vsel %vm28, %v92, 0.0
    %v94 = vadd.f32 %v91, %v93
    %v95 = vrot.slane %v94, 4
    %v96 = vadd.f32 %v94, %v95
    %v97 = vrot.slane %v96, 2
    %v98 = vadd.f32 %v96, %v97
    %v99 = vrot.slane %v98, 1
    %v100 = vadd.f32 %v98, %v99
    %v101 = vsel %vm89, %v53, 0.0
    %v102 = vsel %vm90, %v54, 0.0
    %v103 = vsel %vm28, %v102, 0.0
    %v104 = vadd.f32 %v101, %v103
    %v105 = vrot.slane %v104, 4
    %v106 = vadd.f32 %v104, %v105
    %v107 = vrot.slane %v106, 2
    %v108 = vadd.f32 %v106, %v107
    %v109 = vrot.slane %v108, 1
    %v110 = vadd.f32 %v108, %v109
    %v111 = vsub.f32 %v50, %v100
    %v112 = vrsqrt.pop %v111
    %v113 = vmul.f32 %v111, %v112
    %vm114 = vcmp.eq.f32.partialorder %v111, inf
    %v115 = vsel %vm114, %v111, %v113
    %vm116 = vcmp.eq.f32.partialorder %v111, 0.0
    %v117 = vand.u32 %v111, 2147483648
    %v118 = vsel %vm116, %v117, %v115
    %v119 = vmul.f32 %v118, %v110
    %v120 = vrcp.pop %v80
    %v121 = vmul.f32 %v119, %v120
    %122 = vst [vmem:[#allocation5] sm:$0x1] %v121
    // Predicated region
    $region14: #{tpu_custom_call.1} parent=1 // pred_check
      _
    $region15: #{tpu_custom_call.1} parent=1 // pred_check_branch
      %124 = sbr.rel (0) target = $region17
    $region16: #{tpu_custom_call.1} parent=1 // pred_region
      %s126 = ssub.s32 16, 16
      %127 = vsyncadd [#allocation4], %s126
      %s129 = sshll.u32 [#allocation5], 4
      %s130 = int_to_ptr.vmem [resolvable:$true] %s129
      %132 = dma.vmem_to_hbm [thread:$0]  %s130, 16, %s2, [#allocation4]
    $region17: #{tpu_custom_call.1} parent=1 // pred_fallthru
      _
    // Predicated region
    $region18: #{tpu_custom_call.1} parent=1 // pred_check
      _
    $region19: #{tpu_custom_call.1} parent=1 // pred_check_branch
      %134 = sbr.rel (0) target = $region21
    $region20: #{tpu_custom_call.1} parent=1 // pred_region
      %135 = dma.done [#allocation4], 16
    $region21: #{tpu_custom_call.1} parent=1 // pred_fallthru
      _
    %136 = vsyncpa [#allocation3], 1
    %137 = vsyncpa [#allocation4], 1

</llo_original>
